<compile_context>
chip_gen: v7x
topology: tpu7x:2x2x1
jax: 0.10.0
libtpu: 0.0.40
codegen_flags: <defaults>
</compile_context>

<pallas_src>
import math

import jax
import jax.numpy as jnp
from jax import lax
from jax.experimental import pallas as pl
from jax.experimental.pallas import tpu as pltpu


# ----------------------------------------------------------------------------
# Kernel: fused 3x3 / stride-2 conv + bias + ReLU on one (batch, row-tile) block
# ----------------------------------------------------------------------------
def conv_tap_kernel(pe_ref, po_ref, w0_ref, w1_ref, w2_ref, b_ref, o_ref):
    # pe_ref: (1, 3*Cin, TS) bf16  even-column tap planes (kh-major, ci-minor) [pipelined]
    # po_ref: (1, 3*Cin, TS) bf16  odd-column  tap planes                      [pipelined]
    # w0/1/2: (Cout, 3*Cin)  bf16  weights for the kw=0 / kw=1 / kw=2 taps     [resident]
    # b_ref : (Cout, 1)      f32                                               [resident]
    # o_ref : (1, Cout, TS)        lane-dense output tile (TS = TR*PW, 128-multiple)
    ev = pe_ref[0]                                    # [12, TS]
    od = po_ref[0]                                    # [12, TS]

    # kw = 0 tap: even input columns, unshifted.
    acc = jnp.dot(w0_ref[...], ev, preferred_element_type=jnp.float32)
    # kw = 1 tap: odd input columns, unshifted.
    acc += jnp.dot(w1_ref[...], od, preferred_element_type=jnp.float32)
    # kw = 2 tap: even input columns shifted by one output column.  Each output
    # row owns a PW-wide lane group with PW >= OW+1, so the shift never crosses
    # a row boundary for valid columns; the wrapped lane only lands in pad
    # columns that the wrapper slices off.
    ev_s = jnp.concatenate([ev[:, 1:], ev[:, :1]], axis=1)
    acc += jnp.dot(w2_ref[...], ev_s, preferred_element_type=jnp.float32)

    # NOTE: low MXU occupancy here is fine -- this kernel is HBM-bound.
    o_ref[0] = jnp.maximum(acc + b_ref[...], 0.0).astype(o_ref.dtype)


# ----------------------------------------------------------------------------
# Wrapper-side plumbing
# ----------------------------------------------------------------------------
def _round_up(a, b):
    return -(-a // b) * b


def _spatial_tiling(OH, OW, target_lanes=8192):
    """Pick (PW, TR, OH_pad).

    PW     : lanes per output row, >= OW+1 (the +1 column feeds the kw=2 shift),
             rounded to 8 so a modest row-tile already makes TS a 128-multiple.
    TR     : output rows per tile; TR*PW (the lane-dense tile TS) is a multiple
             of 128 and targets ~`target_lanes` lanes.
    OH_pad : OH rounded up to a multiple of TR (zero rows, sliced off later).
    """
    PW = _round_up(OW + 1, 8)
    row_mult = 128 // math.gcd(PW, 128)          # TR must be a multiple of this
    TR = max(row_mult, (target_lanes // PW) // row_mult * row_mult)
    TR = min(TR, _round_up(OH, row_mult))
    OH_pad = _round_up(OH, TR)
    return PW, TR, OH_pad


def _build_tap_planes(x, OH, OW, OH_pad, PW):
    """x: [B, Cin, H, W] f32 -> (even, odd) tap planes, each [B, 3*Cin, OH_pad*PW] bf16.

    Plane row q = kh*Cin + ci holds, for output position (oh, ow):
      even: x_pad[ci, 2*oh + kh, 2*ow]       (kw=0; kw=2 is this shifted by one lane)
      odd : x_pad[ci, 2*oh + kh, 2*ow + 1]   (kw=1)
    This is a single cheap fused pass (~24 half-res bf16 planes), NOT the 9-tap
    K=36 im2col matrix of the previous version.
    """
    B, Cin, H, W = x.shape
    xp = jnp.pad(x.astype(jnp.bfloat16), ((0, 0), (0, 0), (1, 1), (1, 1)))
    ev_l, od_l = [], []
    for kh in range(3):
        rows = xp[:, :, kh:kh + 2 * OH:2, :]          # [B, Cin, OH, W+2]
        ev_l.append(rows[:, :, :, 0::2])              # padded col 2*ow
        od_l.append(rows[:, :, :, 1::2])              # padded col 2*ow + 1

    def finish(parts):
        p = jnp.stack(parts, axis=1)                  # [B, 3, Cin, OH, width]
        p = jnp.pad(p, ((0, 0), (0, 0), (0, 0),
                        (0, OH_pad - OH), (0, PW - p.shape[-1])))
        return p.reshape(B, 3 * Cin, OH_pad * PW)

    return finish(ev_l), finish(od_l)


def backbone_autonet_forward(x, mask, w, b, *, feature_dtype=jnp.float32):
    """x: [B, Cin, H, W] f32 (NCHW), mask: [B, H, W] bool.
    Returns {'0': (features [B, Cout, OH, OW] feature_dtype, mask [B, OH, OW] bool)}.

    feature_dtype=jnp.bfloat16 halves the dominant output writeback stream
    (bandwidth-bound kernel); the default f32 matches the PyTorch module.
    """
    B, Cin, H, W = x.shape
    Cout, _, KH, KW = w.shape
    assert (KH, KW) == (3, 3)
    stride, pad = 2, 1
    OH = (H + 2 * pad - KH) // stride + 1
    OW = (W + 2 * pad - KW) // stride + 1

    PW, TR, OH_pad = _spatial_tiling(OH, OW)
    TS = TR * PW                         # lane-dense spatial tile (multiple of 128)
    S_flat = OH_pad * PW
    n_tiles = OH_pad // TR
    K = 3 * Cin                          # 12 tap rows per parity

    # ---- compact tap planes (bf16) + per-tap weight matrices ---------------
    pe, po = _build_tap_planes(x, OH, OW, OH_pad, PW)
    w_bf = w.astype(jnp.bfloat16)

    def tap_w(kw):                       # [Cout, Cin, 3] -> [Cout, 3*Cin] (kh-major)
        return jnp.transpose(w_bf[:, :, :, kw], (0, 2, 1)).reshape(Cout, K)

    w0, w1, w2 = tap_w(0), tap_w(1), tap_w(2)
    b_col = b.reshape(Cout, 1).astype(jnp.float32)

    out_bytes = jnp.dtype(feature_dtype).itemsize
    cost = pl.CostEstimate(
        flops=2 * B * Cout * 3 * K * S_flat,
        transcendentals=0,
        bytes_accessed=(2 * B * K * S_flat * 2          # tap planes (bf16)
                        + 3 * Cout * K * 2 + Cout * 4   # resident weights + bias
                        + B * Cout * S_flat * out_bytes))

    feat_flat = pl.pallas_call(
        conv_tap_kernel,
        out_shape=jax.ShapeDtypeStruct((B, Cout, S_flat), feature_dtype),
        grid=(B, n_tiles),
        in_specs=[
            pl.BlockSpec((1, K, TS), lambda bb, m: (bb, 0, m)),   # even planes (pipelined)
            pl.BlockSpec((1, K, TS), lambda bb, m: (bb, 0, m)),   # odd planes  (pipelined)
            pl.BlockSpec((Cout, K), lambda bb, m: (0, 0)),        # resident W (kw=0)
            pl.BlockSpec((Cout, K), lambda bb, m: (0, 0)),        # resident W (kw=1)
            pl.BlockSpec((Cout, K), lambda bb, m: (0, 0)),        # resident W (kw=2)
            pl.BlockSpec((Cout, 1), lambda bb, m: (0, 0)),        # resident bias
        ],
        out_specs=pl.BlockSpec((1, Cout, TS), lambda bb, m: (bb, 0, m)),
        compiler_params=pltpu.CompilerParams(
            dimension_semantics=("parallel", "parallel"),   # megacore / v7x 2-TC split
            vmem_limit_bytes=32 * 1024 * 1024,              # ~10x headroom over footprint
        ),
        cost_estimate=cost,
    )(pe, po, w0, w1, w2, b_col)

    # Output is channel-major and lane-padded: reshape + slice only (no transpose).
    features = feat_flat.reshape(B, Cout, OH_pad, PW)[:, :, :OH, :OW]

    # ---- mask: F.interpolate(m[None].float(), size=(OH,OW)).to(bool)[0] ----
    # Nearest-neighbor on a 0/1 map == integer-index gather (exact; 'nearest',
    # not 'nearest-exact' -- keep the floor rounding).
    ri = (jnp.arange(OH) * H) // OH
    ci = (jnp.arange(OW) * W) // OW
    mask_out = mask[:, ri][:, :, ci]

    return {'0': (features, mask_out)}


# ----------------------------------------------------------------------------
# Pure-JAX reference for verification
# ----------------------------------------------------------------------------
def reference(x, mask, w, b):
    y = lax.conv_general_dilated(
        x, w, window_strides=(2, 2), padding=((1, 1), (1, 1)),
        dimension_numbers=('NCHW', 'OIHW', 'NCHW'))
    y = jnp.maximum(y + b[None, :, None, None], 0.0)
    OH, OW = y.shape[-2:]
    H, W = mask.shape[-2:]
    ri = (jnp.arange(OH) * H) // OH
    ci = (jnp.arange(OW) * W) // OW
    m = mask[:, ri][:, :, ci]
    return y, m


if __name__ == "__main__":
    key = jax.random.PRNGKey(0)
    k_x, k_m, k_w, k_b = jax.random.split(key, 4)

    B, Cin, H, W = 2, 4, 16, 16
    Cout, KH, KW = 32, 3, 3

    x = jax.random.normal(k_x, (B, Cin, H, W), dtype=jnp.float32)
    mask = jax.random.uniform(k_m, (B, H, W)) > 0.5          # bool padding mask
    w = jax.random.normal(k_w, (Cout, Cin, KH, KW), dtype=jnp.float32) * 0.1
    b = jax.random.normal(k_b, (Cout,), dtype=jnp.float32) * 0.1

    out = backbone_autonet_forward(x, mask, w, b)
    feat, mask_out = out['0']
    jax.block_until_ready(feat)
    jax.block_until_ready(mask_out)

    feat_ref, mask_ref = reference(x, mask, w, b)
    assert feat.shape == (B, Cout, 8, 8) and mask_out.shape == (B, 8, 8)
    # bf16 matmul operands / f32 accumulate vs the f32 conv reference (stated
    # precision trade-off of the kernel's API).
    assert bool(jnp.allclose(feat, feat_ref, atol=2e-2, rtol=2e-2))
    assert bool(jnp.all(mask_out == mask_ref))

    print("KERNEL_OK")
</pallas_src>

<mosaic_0001>
module attributes {stable_mosaic.version = 11 : i64} {
  func.func @conv_tap_kernel(%arg0: i32, %arg1: i32, %arg2: memref<1x12x128xbf16, #tpu.memory_space<vmem>>, %arg3: memref<1x12x128xbf16, #tpu.memory_space<vmem>>, %arg4: memref<32x12xbf16, #tpu.memory_space<vmem>>, %arg5: memref<32x12xbf16, #tpu.memory_space<vmem>>, %arg6: memref<32x12xbf16, #tpu.memory_space<vmem>>, %arg7: memref<32x1xf32, #tpu.memory_space<vmem>>, %arg8: memref<1x32x128xf32, #tpu.memory_space<vmem>>) attributes {dimension_semantics = [#tpu.dimension_semantics<parallel>, #tpu.dimension_semantics<parallel>], iteration_bounds = array<i64: 2, 1>, scalar_prefetch = 0 : i64, scratch_operands = 0 : i64, tpu.core_type = #tpu.core_type<tc>, window_params = [{transform_indices = @transform_0, window_bounds = array<i64: 1, 12, 128>}, {transform_indices = @transform_1, window_bounds = array<i64: 1, 12, 128>}, {pipeline_mode = #tpu.pipeline_mode<synchronous>, transform_indices = @transform_2, window_bounds = array<i64: 32, 12>}, {pipeline_mode = #tpu.pipeline_mode<synchronous>, transform_indices = @transform_3, window_bounds = array<i64: 32, 12>}, {pipeline_mode = #tpu.pipeline_mode<synchronous>, transform_indices = @transform_4, window_bounds = array<i64: 32, 12>}, {pipeline_mode = #tpu.pipeline_mode<synchronous>, transform_indices = @transform_5, window_bounds = array<i64: 32, 1>}, {transform_indices = @transform_6, window_bounds = array<i64: 1, 32, 128>}]} {
    %c0 = arith.constant 0 : index
    %c0_0 = arith.constant 0 : index
    %c0_1 = arith.constant 0 : index
    %0 = vector.load %arg2[%c0, %c0_0, %c0_1] : memref<1x12x128xbf16, #tpu.memory_space<vmem>>, vector<1x12x128xbf16>
    %1 = vector.shape_cast %0 : vector<1x12x128xbf16> to vector<12x128xbf16>
    %c0_2 = arith.constant 0 : index
    %c0_3 = arith.constant 0 : index
    %c0_4 = arith.constant 0 : index
    %2 = vector.load %arg3[%c0_2, %c0_3, %c0_4] : memref<1x12x128xbf16, #tpu.memory_space<vmem>>, vector<1x12x128xbf16>
    %3 = vector.shape_cast %2 : vector<1x12x128xbf16> to vector<12x128xbf16>
    %c0_5 = arith.constant 0 : index
    %c0_6 = arith.constant 0 : index
    %4 = vector.load %arg4[%c0_5, %c0_6] : memref<32x12xbf16, #tpu.memory_space<vmem>>, vector<32x12xbf16>
    %cst = arith.constant dense<0.000000e+00> : vector<32x128xf32>
    %5 = tpu.matmul %4, %1, %cst {dimension_numbers = #tpu.dot_dimension_numbers<[1], [0], [0], [1], [0, 0, 1, 1], [], []>} : vector<32x12xbf16>, vector<12x128xbf16>, vector<32x128xf32> -> vector<32x128xf32>
    %c0_7 = arith.constant 0 : index
    %c0_8 = arith.constant 0 : index
    %6 = vector.load %arg5[%c0_7, %c0_8] : memref<32x12xbf16, #tpu.memory_space<vmem>>, vector<32x12xbf16>
    %cst_9 = arith.constant dense<0.000000e+00> : vector<32x128xf32>
    %7 = tpu.matmul %6, %3, %cst_9 {dimension_numbers = #tpu.dot_dimension_numbers<[1], [0], [0], [1], [0, 0, 1, 1], [], []>} : vector<32x12xbf16>, vector<12x128xbf16>, vector<32x128xf32> -> vector<32x128xf32>
    %8 = arith.addf %5, %7 : vector<32x128xf32>
    %9 = vector.extract_strided_slice %1 {offsets = [0, 1], sizes = [12, 127], strides = [1, 1]} : vector<12x128xbf16> to vector<12x127xbf16>
    %10 = vector.extract_strided_slice %1 {offsets = [0, 0], sizes = [12, 1], strides = [1, 1]} : vector<12x128xbf16> to vector<12x1xbf16>
    %11 = tpu.concatenate %9, %10 in 1 : vector<12x127xbf16>, vector<12x1xbf16> -> vector<12x128xbf16>
    %c0_10 = arith.constant 0 : index
    %c0_11 = arith.constant 0 : index
    %12 = vector.load %arg6[%c0_10, %c0_11] : memref<32x12xbf16, #tpu.memory_space<vmem>>, vector<32x12xbf16>
    %cst_12 = arith.constant dense<0.000000e+00> : vector<32x128xf32>
    %13 = tpu.matmul %12, %11, %cst_12 {dimension_numbers = #tpu.dot_dimension_numbers<[1], [0], [0], [1], [0, 0, 1, 1], [], []>} : vector<32x12xbf16>, vector<12x128xbf16>, vector<32x128xf32> -> vector<32x128xf32>
    %14 = arith.addf %8, %13 : vector<32x128xf32>
    %c0_13 = arith.constant 0 : index
    %c0_14 = arith.constant 0 : index
    %15 = vector.load %arg7[%c0_13, %c0_14] : memref<32x1xf32, #tpu.memory_space<vmem>>, vector<32x1xf32>
    %16 = vector.broadcast %15 : vector<32x1xf32> to vector<32x128xf32>
    %17 = arith.addf %14, %16 : vector<32x128xf32>
    %cst_15 = arith.constant 0.000000e+00 : f32
    %18 = vector.broadcast %cst_15 : f32 to vector<32x128xf32>
    %19 = arith.maximumf %17, %18 : vector<32x128xf32>
    %c0_16 = arith.constant 0 : index
    %c0_17 = arith.constant 0 : index
    %c0_18 = arith.constant 0 : index
    %20 = vector.load %arg8[%c0_16, %c0_17, %c0_18] : memref<1x32x128xf32, #tpu.memory_space<vmem>>, vector<1x32x128xf32>
    %21 = vector.shape_cast %20 : vector<1x32x128xf32> to vector<32x128xf32>
    %22 = vector.shape_cast %19 : vector<32x128xf32> to vector<1x32x128xf32>
    tpu.vector_store %arg8[%c0_16, %c0_17, %c0_18], %22 {strides = array<i32>} : memref<1x32x128xf32, #tpu.memory_space<vmem>>, vector<1x32x128xf32>,
    return
  }
  func.func @transform_0(%arg0: i32, %arg1: i32) -> (i32, i32, i32) {
    %c0_i32 = arith.constant 0 : i32
    %c0_i32_0 = arith.constant 0 : i32
    return %arg0, %c0_i32, %arg1 : i32, i32, i32
  }
  func.func @transform_1(%arg0: i32, %arg1: i32) -> (i32, i32, i32) {
    %c0_i32 = arith.constant 0 : i32
    %c0_i32_0 = arith.constant 0 : i32
    return %arg0, %c0_i32, %arg1 : i32, i32, i32
  }
  func.func @transform_2(%arg0: i32, %arg1: i32) -> (i32, i32) {
    %c0_i32 = arith.constant 0 : i32
    %c0_i32_0 = arith.constant 0 : i32
    %c0_i32_1 = arith.constant 0 : i32
    return %c0_i32, %c0_i32_0 : i32, i32
  }
  func.func @transform_3(%arg0: i32, %arg1: i32) -> (i32, i32) {
    %c0_i32 = arith.constant 0 : i32
    %c0_i32_0 = arith.constant 0 : i32
    %c0_i32_1 = arith.constant 0 : i32
    return %c0_i32, %c0_i32_0 : i32, i32
  }
  func.func @transform_4(%arg0: i32, %arg1: i32) -> (i32, i32) {
    %c0_i32 = arith.constant 0 : i32
    %c0_i32_0 = arith.constant 0 : i32
    %c0_i32_1 = arith.constant 0 : i32
    return %c0_i32, %c0_i32_0 : i32, i32
  }
  func.func @transform_5(%arg0: i32, %arg1: i32) -> (i32, i32) {
    %c0_i32 = arith.constant 0 : i32
    %c0_i32_0 = arith.constant 0 : i32
    %c0_i32_1 = arith.constant 0 : i32
    return %c0_i32, %c0_i32_0 : i32, i32
  }
  func.func @transform_6(%arg0: i32, %arg1: i32) -> (i32, i32, i32) {
    %c0_i32 = arith.constant 0 : i32
    %c0_i32_0 = arith.constant 0 : i32
    return %arg0, %c0_i32, %arg1 : i32, i32, i32
  }
}

</mosaic_0001>

<llo_original>
// kernel: tpu_custom_call.1
$region0: #{tpu_custom_call.1}
  #allocation0 [shape = 'u32[]', space=smem, size = 0x4, offset = 0x4, fixed_abs, tag = 'smem constant byte address 0x4 - core index']
  #allocation1 [shape = 'u32[144,128]{1,0:T(1,128)}', space=vmem, size = 0x12000, scoped, tag = 'internal scratch']
  %s0 = inlined_call_operand.vmem [shape: bf16[2,12,128], index: 0, kind: input, shape index: {}]
  %s1 = inlined_call_operand.vmem [shape: bf16[2,12,128], index: 1, kind: input, shape index: {}]
  %s2 = inlined_call_operand.vmem [shape: bf16[32,12], index: 2, kind: input, shape index: {}]
  %s3 = inlined_call_operand.vmem [shape: bf16[32,12], index: 3, kind: input, shape index: {}]
  %s4 = inlined_call_operand.vmem [shape: bf16[32,12], index: 4, kind: input, shape index: {}]
  %s5 = inlined_call_operand.vmem [shape: f32[32,1], index: 5, kind: input, shape index: {}]
  %s6 = inlined_call_operand.hbm [shape: f32[2,32,128], index: 6, kind: output, shape index: {}]
  %s7 = sld [smem:[#allocation0]]
  $region57: #{tpu_custom_call.1} parent=0
    _
  %s9 = ssub.s32 1, %s7
  %s10 = scalar_select 0, %s9, %s7
  $region1: #{tpu_custom_call.1} parent=0
    #allocation2 [shape = 'u8[32768]{0}', space=vmem, size = 0x8000, scoped, tag = 'output window, operand 0']
    #allocation3 [shape = 's32[2]{0}', space=sflag, size = 0x8, scoped, tag = 'scoped memory for tpu_custom_call.1']
    %11 = vsyncpa [#allocation3], 0
    %s12 = scalar_lea.sflag [#allocation3], 1
    %13 = vsyncpa %s12, 0
    loop: start=0, step=1, limit=4
    $region2: #{tpu_custom_call.1} parent=1 // loop_pre_header
      _
    $region3: #{tpu_custom_call.1} parent=1 // loop_header
      %s15 = sphi 0, %s19
      %p16 = scmp.ge.s32.totalorder %s15, 4
      %s22 = sphi 0, %s34
      %s23 = sphi 0, %s30
      %s24 = sphi 0, %s22
      %s25 = sphi 0, %s23
      %s26 = sphi 0, %s24
      %s27 = sphi 0, %s25
      %s39 = sphi 0, %s41
      %s42 = sphi 0, %s39
      %s43 = sphi 0, %s42
      %s59 = sphi 0, %s43
      %s67 = sphi 0, %s69
      %s70 = sphi 0, %s67
      %s71 = sphi 0, %s70
      %s87 = sphi 0, %s71
      %s91 = sphi 0, %s91
      %s93 = sphi 0, %s91
      %s94 = sphi 0, %s93
      %s108 = sphi 0, %s94
      %s112 = sphi 0, %s112
      %s114 = sphi 0, %s112
      %s115 = sphi 0, %s114
      %s129 = sphi 0, %s115
      %s133 = sphi 0, %s133
      %s135 = sphi 0, %s133
      %s136 = sphi 0, %s135
      %s150 = sphi 0, %s136
      %s154 = sphi 0, %s154
      %s156 = sphi 0, %s154
      %s157 = sphi 0, %s156
      %s171 = sphi 0, %s157
      %s179 = sphi 0, %s181
      %s182 = sphi 0, %s179
      %s183 = sphi 0, %s182
      %s199 = sphi 0, %s183
    $region4: #{tpu_custom_call.1} parent=1 // loop_header_branch
      %18 = sbr.rel (%p16) target = $region8
    $region5: #{tpu_custom_call.1} parent=1 // loop_body
      %s20 = ssub.s32 %s15, 1
      %s21 = ssub.s32 %s15, 2
      %s28 = sadd.s32 1, %s23
      %p29 = scmp.ge.s32.totalorder %s28, 1
      %s30 = scalar_select %p29, 0, %s28
      %s31 = sadd.s32 1, %s22
      %s32 = scalar_select %p29, %s31, %s22
      %p33 = scmp.ge.s32.totalorder %s32, 2
      %s34 = scalar_select %p33, 0, %s32
      %s35 = ssub.s32 %s22, %s34
      %s36 = ssub.s32 %s23, %s30
      %s37 = sor.u32 %s35, %s36
      %p38 = scmp.eq.s32.totalorder %s37, 0
      %s40 = sadd.s32 %s39, 1
      %s41 = scalar_select %p38, %s39, %s40
      %p44 = pneg %p38
      %p45 = scmp.eq.s32.totalorder %s15, 1
      %p46 = por %p44, %p45
      %p47 = scmp.ne.s32.totalorder %s39, %s42
      %p48 = scmp.eq.s32.totalorder %s15, 0
      %p49 = por %p47, %p48
      %p50 = scmp.ne.s32.totalorder %s39, %s42
      %p51 = scmp.eq.s32.totalorder %s20, 1
      %p52 = por %p50, %p51
      %p53 = scmp.ne.s32.totalorder %s42, %s43
      %p54 = scmp.eq.s32.totalorder %s20, 0
      %p55 = por %p53, %p54
      %p56 = scmp.ne.s32.totalorder %s42, %s43
      %p57 = scmp.eq.s32.totalorder %s21, 1
      %p58 = por %p56, %p57
      %p60 = scmp.ne.s32.totalorder %s43, %s59
      %p61 = scmp.eq.s32.totalorder %s21, 0
      %p62 = por %p60, %p61
      %s63 = ssub.s32 %s22, %s34
      %s64 = ssub.s32 %s23, %s30
      %s65 = sor.u32 %s63, %s64
      %p66 = scmp.eq.s32.totalorder %s65, 0
      %s68 = sadd.s32 %s67, 1
      %s69 = scalar_select %p66, %s67, %s68
      %p72 = pneg %p66
      %p73 = scmp.eq.s32.totalorder %s15, 1
      %p74 = por %p72, %p73
      %p75 = scmp.ne.s32.totalorder %s67, %s70
      %p76 = scmp.eq.s32.totalorder %s15, 0
      %p77 = por %p75, %p76
      %p78 = scmp.ne.s32.totalorder %s67, %s70
      %p79 = scmp.eq.s32.totalorder %s20, 1
      %p80 = por %p78, %p79
      %p81 = scmp.ne.s32.totalorder %s70, %s71
      %p82 = scmp.eq.s32.totalorder %s20, 0
      %p83 = por %p81, %p82
      %p84 = scmp.ne.s32.totalorder %s70, %s71
      %p85 = scmp.eq.s32.totalorder %s21, 1
      %p86 = por %p84, %p85
      %p88 = scmp.ne.s32.totalorder %s71, %s87
      %p89 = scmp.eq.s32.totalorder %s21, 0
      %p90 = por %p88, %p89
      %s92 = sadd.s32 %s91, 1
      %p95 = scmp.eq.s32.totalorder %s15, 1
      %p96 = scmp.ne.s32.totalorder %s91, %s93
      %p97 = scmp.eq.s32.totalorder %s15, 0
      %p98 = por %p96, %p97
      %p99 = scmp.ne.s32.totalorder %s91, %s93
      %p100 = scmp.eq.s32.totalorder %s20, 1
      %p101 = por %p99, %p100
      %p102 = scmp.ne.s32.totalorder %s93, %s94
      %p103 = scmp.eq.s32.totalorder %s20, 0
      %p104 = por %p102, %p103
      %p105 = scmp.ne.s32.totalorder %s93, %s94
      %p106 = scmp.eq.s32.totalorder %s21, 1
      %p107 = por %p105, %p106
      %p109 = scmp.ne.s32.totalorder %s94, %s108
      %p110 = scmp.eq.s32.totalorder %s21, 0
      %p111 = por %p109, %p110
      %s113 = sadd.s32 %s112, 1
      %p116 = scmp.eq.s32.totalorder %s15, 1
      %p117 = scmp.ne.s32.totalorder %s112, %s114
      %p118 = scmp.eq.s32.totalorder %s15, 0
      %p119 = por %p117, %p118
      %p120 = scmp.ne.s32.totalorder %s112, %s114
      %p121 = scmp.eq.s32.totalorder %s20, 1
      %p122 = por %p120, %p121
      %p123 = scmp.ne.s32.totalorder %s114, %s115
      %p124 = scmp.eq.s32.totalorder %s20, 0
      %p125 = por %p123, %p124
      %p126 = scmp.ne.s32.totalorder %s114, %s115
      %p127 = scmp.eq.s32.totalorder %s21, 1
      %p128 = por %p126, %p127
      %p130 = scmp.ne.s32.totalorder %s115, %s129
      %p131 = scmp.eq.s32.totalorder %s21, 0
      %p132 = por %p130, %p131
      %s134 = sadd.s32 %s133, 1
      %p137 = scmp.eq.s32.totalorder %s15, 1
      %p138 = scmp.ne.s32.totalorder %s133, %s135
      %p139 = scmp.eq.s32.totalorder %s15, 0
      %p140 = por %p138, %p139
      %p141 = scmp.ne.s32.totalorder %s133, %s135
      %p142 = scmp.eq.s32.totalorder %s20, 1
      %p143 = por %p141, %p142
      %p144 = scmp.ne.s32.totalorder %s135, %s136
      %p145 = scmp.eq.s32.totalorder %s20, 0
      %p146 = por %p144, %p145
      %p147 = scmp.ne.s32.totalorder %s135, %s136
      %p148 = scmp.eq.s32.totalorder %s21, 1
      %p149 = por %p147, %p148
      %p151 = scmp.ne.s32.totalorder %s136, %s150
      %p152 = scmp.eq.s32.totalorder %s21, 0
      %p153 = por %p151, %p152
      %s155 = sadd.s32 %s154, 1
      %p158 = scmp.eq.s32.totalorder %s15, 1
      %p159 = scmp.ne.s32.totalorder %s154, %s156
      %p160 = scmp.eq.s32.totalorder %s15, 0
      %p161 = por %p159, %p160
      %p162 = scmp.ne.s32.totalorder %s154, %s156
      %p163 = scmp.eq.s32.totalorder %s20, 1
      %p164 = por %p162, %p163
      %p165 = scmp.ne.s32.totalorder %s156, %s157
      %p166 = scmp.eq.s32.totalorder %s20, 0
      %p167 = por %p165, %p166
      %p168 = scmp.ne.s32.totalorder %s156, %s157
      %p169 = scmp.eq.s32.totalorder %s21, 1
      %p170 = por %p168, %p169
      %p172 = scmp.ne.s32.totalorder %s157, %s171
      %p173 = scmp.eq.s32.totalorder %s21, 0
      %p174 = por %p172, %p173
      %s175 = ssub.s32 %s22, %s34
      %s176 = ssub.s32 %s23, %s30
      %s177 = sor.u32 %s175, %s176
      %p178 = scmp.eq.s32.totalorder %s177, 0
      %s180 = sadd.s32 %s179, 1
      %s181 = scalar_select %p178, %s179, %s180
      %p184 = pneg %p178
      %p185 = scmp.eq.s32.totalorder %s15, 1
      %p186 = por %p184, %p185
      %p187 = scmp.ne.s32.totalorder %s179, %s182
      %p188 = scmp.eq.s32.totalorder %s15, 0
      %p189 = por %p187, %p188
      %p190 = scmp.ne.s32.totalorder %s179, %s182
      %p191 = scmp.eq.s32.totalorder %s20, 1
      %p192 = por %p190, %p191
      %p193 = scmp.ne.s32.totalorder %s182, %s183
      %p194 = scmp.eq.s32.totalorder %s20, 0
      %p195 = por %p193, %p194
      %p196 = scmp.ne.s32.totalorder %s182, %s183
      %p197 = scmp.eq.s32.totalorder %s21, 1
      %p198 = por %p196, %p197
      %p200 = scmp.ne.s32.totalorder %s183, %s199
      %p201 = scmp.eq.s32.totalorder %s21, 0
      %p202 = por %p200, %p201
      %p203 = scmp.le.s32.totalorder 1, %s15
      %p204 = scmp.lt.s32.totalorder %s15, 3
      %p205 = pnand %p203, %p204
      %p206 = pneg %p205
      // Predicated region
      $region9: #{tpu_custom_call.1} parent=5 // pred_check
        _
      $region10: #{tpu_custom_call.1} parent=5 // pred_check_branch
        %208 = sbr.rel (%p205) target = $region12
      $region11: #{tpu_custom_call.1} parent=5 // pred_region
        %s209 = ssub.s32 %s15, 1
        // Predicated region
        $region13: #{tpu_custom_call.1} parent=11 // pred_check
          %p210 = pneg %p104
        $region14: #{tpu_custom_call.1} parent=11 // pred_check_branch
          %212 = sbr.rel (%p210) target = $region16
        $region15: #{tpu_custom_call.1} parent=11 // pred_region
          _
        $region16: #{tpu_custom_call.1} parent=11 // pred_fallthru
          _
        // Predicated region
        $region17: #{tpu_custom_call.1} parent=11 // pred_check
          %p213 = pneg %p125
        $region18: #{tpu_custom_call.1} parent=11 // pred_check_branch
          %215 = sbr.rel (%p213) target = $region20
        $region19: #{tpu_custom_call.1} parent=11 // pred_region
          _
        $region20: #{tpu_custom_call.1} parent=11 // pred_fallthru
          _
        // Predicated region
        $region21: #{tpu_custom_call.1} parent=11 // pred_check
          %p216 = pneg %p146
        $region22: #{tpu_custom_call.1} parent=11 // pred_check_branch
          %218 = sbr.rel (%p216) target = $region24
        $region23: #{tpu_custom_call.1} parent=11 // pred_region
          _
        $region24: #{tpu_custom_call.1} parent=11 // pred_fallthru
          _
        // Predicated region
        $region25: #{tpu_custom_call.1} parent=11 // pred_check
          %p219 = pneg %p167
        $region26: #{tpu_custom_call.1} parent=11 // pred_check_branch
          %221 = sbr.rel (%p219) target = $region28
        $region27: #{tpu_custom_call.1} parent=11 // pred_region
          _
        $region28: #{tpu_custom_call.1} parent=11 // pred_fallthru
          _
      $region12: #{tpu_custom_call.1} parent=5 // pred_fallthru
        _
      %p222 = scmp.lt.s32.totalorder %s15, 2
      // Predicated region
      $region29: #{tpu_custom_call.1} parent=5 // pred_check
        %p223 = pneg %p222
      $region30: #{tpu_custom_call.1} parent=5 // pred_check_branch
        %225 = sbr.rel (%p223) target = $region32
      $region31: #{tpu_custom_call.1} parent=5 // pred_region
        // Predicated region
        $region33: #{tpu_custom_call.1} parent=31 // pred_check
          %p226 = pneg %p49
        $region34: #{tpu_custom_call.1} parent=31 // pred_check_branch
          %228 = sbr.rel (%p226) target = $region36
        $region35: #{tpu_custom_call.1} parent=31 // pred_region
          %p229 = scmp.lt.s32.totalorder %s22, 1
          %s230 = scalar_select %p229, %s22, 1
          %p231 = scmp.lt.s32.totalorder %s23, 0
          %s232 = scalar_select %p231, %s23, 0
          %s233 = smul.addr %s230, 2
          %s234 = sadd.s32 %s232, %s233
          %s235 = smul.addr %s234, 4
          %s236 = scalar_lea.vmem %s0, %s235
        $region36: #{tpu_custom_call.1} parent=31 // pred_fallthru
          _
        // Predicated region
        $region37: #{tpu_custom_call.1} parent=31 // pred_check
          %p237 = pneg %p77
        $region38: #{tpu_custom_call.1} parent=31 // pred_check_branch
          %239 = sbr.rel (%p237) target = $region40
        $region39: #{tpu_custom_call.1} parent=31 // pred_region
          %p240 = scmp.lt.s32.totalorder %s22, 1
          %s241 = scalar_select %p240, %s22, 1
          %p242 = scmp.lt.s32.totalorder %s23, 0
          %s243 = scalar_select %p242, %s23, 0
          %s244 = smul.addr %s241, 2
          %s245 = sadd.s32 %s243, %s244
          %s246 = smul.addr %s245, 4
          %s247 = scalar_lea.vmem %s1, %s246
        $region40: #{tpu_custom_call.1} parent=31 // pred_fallthru
          _
      $region32: #{tpu_custom_call.1} parent=5 // pred_fallthru
        _
      %p248 = scmp.le.s32.totalorder 1, %s15
      %p249 = scmp.lt.s32.totalorder %s15, 3
      %p250 = pnand %p248, %p249
      %p251 = pneg %p250
      // Predicated region
      $region41: #{tpu_custom_call.1} parent=5 // pred_check
        _
      $region42: #{tpu_custom_call.1} parent=5 // pred_check_branch
        %253 = sbr.rel (%p250) target = $region44
      $region43: #{tpu_custom_call.1} parent=5 // pred_region
        %s254 = ssub.s32 %s15, 1
        %p255 = scmp.lt.s32.totalorder %s24, 1
        %s256 = scalar_select %p255, %s24, 1
        %p257 = scmp.lt.s32.totalorder %s25, 0
        %s258 = scalar_select %p257, %s25, 0
        %s259 = smul.addr %s256, 2
        %s260 = sadd.s32 %s258, %s259
        %s261 = smul.addr %s260, 4
        %s262 = scalar_lea.vmem %s0, %s261
        %p263 = pneg %p55
        %p264 = pneg %p52
        %p265 = scmp.lt.s32.totalorder %s24, 1
        %s266 = scalar_select %p265, %s24, 1
        %p267 = scmp.lt.s32.totalorder %s25, 0
        %s268 = scalar_select %p267, %s25, 0
        %s269 = smul.addr %s266, 2
        %s270 = sadd.s32 %s268, %s269
        %s271 = smul.addr %s270, 4
        %s272 = scalar_lea.vmem %s1, %s271
        %p273 = pneg %p83
        %p274 = pneg %p80
        %p275 = pneg %p104
        %p276 = pneg %p101
        %p277 = pneg %p125
        %p278 = pneg %p122
        %p279 = pneg %p146
        %p280 = pneg %p143
        %p281 = pneg %p167
        %p282 = pneg %p164
        %p283 = pneg %p195
        %p284 = pneg %p192
        %s285 = sand.u32 %s182, 1
        %s286 = scalar_lea.sflag [#allocation3], %s285
        %s287 = sand.u32 %s182, 1
        %s288 = smul.addr %s287, 32
        %s289 = scalar_lea.vmem [#allocation2], %s288
        %p290 = scmp.lt.s32.totalorder %s24, 1
        %s291 = scalar_select %p290, %s24, 1
        %p292 = scmp.lt.s32.totalorder %s25, 0
        %s293 = scalar_select %p292, %s25, 0
        %s294 = smul.addr %s291, 2
        %s295 = sadd.s32 %s293, %s294
        %s296 = smul.addr %s295, 4
        %s297 = scalar_lea.vmem %s0, %s296
        %p298 = scmp.lt.s32.totalorder %s24, 1
        %s299 = scalar_select %p298, %s24, 1
        %p300 = scmp.lt.s32.totalorder %s25, 0
        %s301 = scalar_select %p300, %s25, 0
        %s302 = smul.addr %s299, 2
        %s303 = sadd.s32 %s301, %s302
        %s304 = smul.addr %s303, 4
        %s305 = scalar_lea.vmem %s1, %s304
        %v307 = vld [vmem:[%s297] sm:$0xf]
        %v308 = vld [vmem:[%s297 + $0x4] sm:$0x3]
        %v309 = vld [vmem:[%s305] sm:$0xf]
        %v310 = vld [vmem:[%s305 + $0x4] sm:$0x3]
        %v311 = vld [vmem:[%s2] sm:$0xf]
        %v312 = vld [vmem:[%s2 + $0x4] sm:$0xf]
        %v313 = vld [vmem:[%s2 + $0x8] sm:$0xf]
        %v314 = vld [vmem:[%s2 + $0xc] sm:$0xf]
        %v315 = vld [vmem:[%s3] sm:$0xf]
        %v316 = vld [vmem:[%s3 + $0x4] sm:$0xf]
        %v317 = vld [vmem:[%s3 + $0x8] sm:$0xf]
        %v318 = vld [vmem:[%s3 + $0xc] sm:$0xf]
        %v323 = vunpack.c.l.b16 %v315
        %v324 = vunpack.c.l.b16 %v316
        %v325 = vunpack.c.l.b16 %v317
        %v326 = vunpack.c.l.b16 %v318
        %v327 = vpack.c.b16 %v324, %v323
        %v328 = vpack.c.b16 %v326, %v325
        %v331 = vunpack.c.l.b16 %v309
        %v332 = vunpack.c.l.b16 %v310
        %v333 = vpack.c.b16 %v332, %v331
        %vm334 = vcmask 97280
        %v336 = vsel %vm334, %v327, 0
        %v339 = vsel %vm334, %v328, 0
        %vm341 = vcmask 1045504
        %v343 = vsel %vm341, %v333, 0
        %345 = vmatprep.subr.bf16.mxu0 0
        %346 = vmatpush1.bf16.msra.mxu0 %v343
        %347 = vmatprep.subr.bf16.mxu0 0
        %348 = vmatpush1.bf16.msra.mxu0 0
        %349 = vmatprep.subr.bf16.mxu0 0
        %350 = vmatpush1.bf16.msra.mxu0 0
        %351 = vmatprep.subr.bf16.mxu0 0
        %352 = vmatpush1.bf16.msra.mxu0 0
        %353 = vmatprep.subr.bf16.mxu0 0
        %354 = vmatpush1.bf16.msra.mxu0 0
        %355 = vmatprep.subr.bf16.mxu0 0
        %356 = vmatpush1.bf16.msra.mxu0 0
        %357 = vmatprep.subr.bf16.mxu0 0
        %358 = vmatpush1.bf16.msra.mxu0 0
        %359 = vmatprep.subr.bf16.mxu0 0
        %360 = vmatpush1.bf16.msra.mxu0 0
        %361 = vmatprep.subr.bf16.mxu0 0
        %362 = vmatpush1.bf16.msra.mxu0 0
        %363 = vmatprep.subr.bf16.mxu0 0
        %364 = vmatpush1.bf16.msra.mxu0 0
        %365 = vmatprep.subr.bf16.mxu0 0
        %366 = vmatpush1.bf16.msra.mxu0 0
        %367 = vmatprep.subr.bf16.mxu0 0
        %368 = vmatpush1.bf16.msra.mxu0 0
        %369 = vmatprep.subr.bf16.mxu0 0
        %370 = vmatpush1.bf16.msra.mxu0 0
        %371 = vmatprep.subr.bf16.mxu0 0
        %372 = vmatpush1.bf16.msra.mxu0 0
        %373 = vmatprep.subr.bf16.mxu0 0
        %374 = vmatpush1.bf16.msra.mxu0 0
        %375 = vmatprep.subr.bf16.mxu0 0
        %376 = vmatpush1.bf16.msra.mxu0 0
        %377 = vmatprep.mubr.bf16.mxu0 0
        %378 = vmatmul.mubr.bf16.gmra.mrb[0].mxu0 %v336
        %v379 = vpop.f32.mrb[0].mxu0
        %v380 = vadd.f32 0.0, %v379
        %v381 = vpop.f32.mrb[0].mxu0
        %v382 = vpop.f32.mrb[0].mxu0
        %v383 = vadd.f32 0.0, %v382
        %v384 = vpop.f32.mrb[0].mxu0
        %385 = vmatprep.mubr.bf16.mxu0 0
        %386 = vmatmul.mubr.bf16.gmra.mrb[0].mxu0 %v339
        %v387 = vpop.f32.mrb[0].mxu0
        %v388 = vadd.f32 0.0, %v387
        %v389 = vpop.f32.mrb[0].mxu0
        %v390 = vpop.f32.mrb[0].mxu0
        %v391 = vadd.f32 0.0, %v390
        %v392 = vpop.f32.mrb[0].mxu0
        %393 = vdwg.mxu0
        %v398 = vunpack.c.l.b16 %v311
        %v399 = vunpack.c.l.b16 %v312
        %v400 = vunpack.c.l.b16 %v313
        %v401 = vunpack.c.l.b16 %v314
        %v402 = vpack.c.b16 %v399, %v398
        %v403 = vpack.c.b16 %v401, %v400
        %v406 = vunpack.c.l.b16 %v307
        %v407 = vunpack.c.l.b16 %v308
        %v408 = vpack.c.b16 %v407, %v406
        %v410 = vsel %vm334, %v402, 0
        %v413 = vsel %vm334, %v403, 0
        %v416 = vsel %vm341, %v408, 0
        %418 = vmatprep.subr.bf16.mxu0 0
        %419 = vmatpush1.bf16.msra.mxu0 %v416
        %420 = vmatprep.subr.bf16.mxu0 0
        %421 = vmatpush1.bf16.msra.mxu0 0
        %422 = vmatprep.subr.bf16.mxu0 0
        %423 = vmatpush1.bf16.msra.mxu0 0
        %424 = vmatprep.subr.bf16.mxu0 0
        %425 = vmatpush1.bf16.msra.mxu0 0
        %426 = vmatprep.subr.bf16.mxu0 0
        %427 = vmatpush1.bf16.msra.mxu0 0
        %428 = vmatprep.subr.bf16.mxu0 0
        %429 = vmatpush1.bf16.msra.mxu0 0
        %430 = vmatprep.subr.bf16.mxu0 0
        %431 = vmatpush1.bf16.msra.mxu0 0
        %432 = vmatprep.subr.bf16.mxu0 0
        %433 = vmatpush1.bf16.msra.mxu0 0
        %434 = vmatprep.subr.bf16.mxu0 0
        %435 = vmatpush1.bf16.msra.mxu0 0
        %436 = vmatprep.subr.bf16.mxu0 0
        %437 = vmatpush1.bf16.msra.mxu0 0
        %438 = vmatprep.subr.bf16.mxu0 0
        %439 = vmatpush1.bf16.msra.mxu0 0
        %440 = vmatprep.subr.bf16.mxu0 0
        %441 = vmatpush1.bf16.msra.mxu0 0
        %442 = vmatprep.subr.bf16.mxu0 0
        %443 = vmatpush1.bf16.msra.mxu0 0
        %444 = vmatprep.subr.bf16.mxu0 0
        %445 = vmatpush1.bf16.msra.mxu0 0
        %446 = vmatprep.subr.bf16.mxu0 0
        %447 = vmatpush1.bf16.msra.mxu0 0
        %448 = vmatprep.subr.bf16.mxu0 0
        %449 = vmatpush1.bf16.msra.mxu0 0
        %450 = vmatprep.mubr.bf16.mxu0 0
        %451 = vmatmul.mubr.bf16.gmra.mrb[0].mxu0 %v410
        %v452 = vpop.f32.mrb[0].mxu0
        %v453 = vadd.f32 %v380, %v452
        %v454 = vpop.f32.mrb[0].mxu0
        %v455 = vpop.f32.mrb[0].mxu0
        %v456 = vadd.f32 %v383, %v455
        %v457 = vpop.f32.mrb[0].mxu0
        %458 = vmatprep.mubr.bf16.mxu0 0
        %459 = vmatmul.mubr.bf16.gmra.mrb[0].mxu0 %v413
        %v460 = vpop.f32.mrb[0].mxu0
        %v461 = vadd.f32 %v388, %v460
        %v462 = vpop.f32.mrb[0].mxu0
        %v463 = vpop.f32.mrb[0].mxu0
        %v464 = vadd.f32 %v391, %v463
        %v465 = vpop.f32.mrb[0].mxu0
        %466 = vdwg.mxu0
        %467 = vrot.lane.b32.xlu0 %v408, 127
        %v468 = vpop.permute.xlu0 %467
        %v470 = vld [vmem:[%s4] sm:$0xf]
        %v471 = vld [vmem:[%s4 + $0x4] sm:$0xf]
        %v472 = vld [vmem:[%s4 + $0x8] sm:$0xf]
        %v473 = vld [vmem:[%s4 + $0xc] sm:$0xf]
        %v478 = vunpack.c.l.b16 %v470
        %v479 = vunpack.c.l.b16 %v471
        %v480 = vunpack.c.l.b16 %v472
        %v481 = vunpack.c.l.b16 %v473
        %v482 = vpack.c.b16 %v479, %v478
        %v483 = vpack.c.b16 %v481, %v480
        %v485 = vsel %vm334, %v482, 0
        %v488 = vsel %vm334, %v483, 0
        %v490 = vsel %vm341, %v468, 0
        %492 = vmatprep.subr.bf16.mxu0 0
        %493 = vmatpush1.bf16.msra.mxu0 %v490
        %494 = vmatprep.subr.bf16.mxu0 0
        %495 = vmatpush1.bf16.msra.mxu0 0
        %496 = vmatprep.subr.bf16.mxu0 0
        %497 = vmatpush1.bf16.msra.mxu0 0
        %498 = vmatprep.subr.bf16.mxu0 0
        %499 = vmatpush1.bf16.msra.mxu0 0
        %500 = vmatprep.subr.bf16.mxu0 0
        %501 = vmatpush1.bf16.msra.mxu0 0
        %502 = vmatprep.subr.bf16.mxu0 0
        %503 = vmatpush1.bf16.msra.mxu0 0
        %504 = vmatprep.subr.bf16.mxu0 0
        %505 = vmatpush1.bf16.msra.mxu0 0
        %506 = vmatprep.subr.bf16.mxu0 0
        %507 = vmatpush1.bf16.msra.mxu0 0
        %508 = vmatprep.subr.bf16.mxu0 0
        %509 = vmatpush1.bf16.msra.mxu0 0
        %510 = vmatprep.subr.bf16.mxu0 0
        %511 = vmatpush1.bf16.msra.mxu0 0
        %512 = vmatprep.subr.bf16.mxu0 0
        %513 = vmatpush1.bf16.msra.mxu0 0
        %514 = vmatprep.subr.bf16.mxu0 0
        %515 = vmatpush1.bf16.msra.mxu0 0
        %516 = vmatprep.subr.bf16.mxu0 0
        %517 = vmatpush1.bf16.msra.mxu0 0
        %518 = vmatprep.subr.bf16.mxu0 0
        %519 = vmatpush1.bf16.msra.mxu0 0
        %520 = vmatprep.subr.bf16.mxu0 0
        %521 = vmatpush1.bf16.msra.mxu0 0
        %522 = vmatprep.subr.bf16.mxu0 0
        %523 = vmatpush1.bf16.msra.mxu0 0
        %524 = vmatprep.mubr.bf16.mxu0 0
        %525 = vmatmul.mubr.bf16.gmra.mrb[0].mxu0 %v485
        %v526 = vpop.f32.mrb[0].mxu0
        %v527 = vadd.f32 0.0, %v526
        %v528 = vpop.f32.mrb[0].mxu0
        %v529 = vpop.f32.mrb[0].mxu0
        %v530 = vadd.f32 0.0, %v529
        %v531 = vpop.f32.mrb[0].mxu0
        %532 = vmatprep.mubr.bf16.mxu0 0
        %533 = vmatmul.mubr.bf16.gmra.mrb[0].mxu0 %v488
        %v534 = vpop.f32.mrb[0].mxu0
        %v535 = vadd.f32 0.0, %v534
        %v536 = vpop.f32.mrb[0].mxu0
        %v537 = vpop.f32.mrb[0].mxu0
        %v538 = vadd.f32 0.0, %v537
        %v539 = vpop.f32.mrb[0].mxu0
        %540 = vdwg.mxu0
        %v541 = vadd.f32 %v453, %v527
        %v542 = vadd.f32 %v456, %v530
        %v543 = vadd.f32 %v461, %v535
        %v544 = vadd.f32 %v464, %v538
        %v545 = vld [vmem:[%s5] sm:$0xff]
        %v546 = vld [vmem:[%s5 + $0x8] sm:$0xff]
        %v547 = vld [vmem:[%s5 + $0x10] sm:$0xff]
        %v548 = vld [vmem:[%s5 + $0x18] sm:$0xff]
        %550 = vset.pattern.permute.xlu0 0
        %551 = vperm.xlu0 %550, %v545
        %v552 = vpop.permute.xlu0 %551
        %555 = vset.pattern.permute.xlu0 0
        %556 = vperm.xlu0 %555, %v546
        %v557 = vpop.permute.xlu0 %556
        %560 = vset.pattern.permute.xlu0 0
        %561 = vperm.xlu0 %560, %v547
        %v562 = vpop.permute.xlu0 %561
        %565 = vset.pattern.permute.xlu0 0
        %566 = vperm.xlu0 %565, %v548
        %v567 = vpop.permute.xlu0 %566
        %v569 = vadd.f32 %v541, %v552
        %v570 = vadd.f32 %v542, %v557
        %v571 = vadd.f32 %v543, %v562
        %v572 = vadd.f32 %v544, %v567
        %v573 = vmax.f32 %v569, 0.0
        %v574 = vmax.f32 %v570, 0.0
        %v575 = vmax.f32 %v571, 0.0
        %v576 = vmax.f32 %v572, 0.0
        %577 = vst [vmem:[%s289] sm:$0xff] %v573
        %578 = vst [vmem:[%s289 + $0x8] sm:$0xff] %v574
        %579 = vst [vmem:[%s289 + $0x10] sm:$0xff] %v575
        %580 = vst [vmem:[%s289 + $0x18] sm:$0xff] %v576
        %s581 = sand.u32 %s182, 1
        %s582 = scalar_lea.sflag [#allocation3], %s581
        %s583 = sand.u32 %s182, 1
        %s584 = smul.addr %s583, 32
        %s585 = scalar_lea.vmem [#allocation2], %s584
        // Predicated region
        $region45: #{tpu_custom_call.1} parent=43 // pred_check
          %p586 = pneg %p192
        $region46: #{tpu_custom_call.1} parent=43 // pred_check_branch
          %588 = sbr.rel (%p586) target = $region48
        $region47: #{tpu_custom_call.1} parent=43 // pred_region
          %s590 = ssub.s32 512, 512
          %591 = vsyncadd %s582, %s590
          %s592 = smul.addr %s24, 4
          %s593 = sadd.s32 %s25, %s592
          %s594 = smul.addr %s593, 128
          %s595 = scalar_lea.hbm %s6, %s594
          %s596 = sshll.u32 %s585, 4
          %s597 = int_to_ptr.vmem [resolvable:$true] %s596
          %602 = dma.vmem_to_hbm [thread:$0]  %s597, 512, %s595, %s582, 128, 128, 8
        $region48: #{tpu_custom_call.1} parent=43 // pred_fallthru
          _
      $region44: #{tpu_custom_call.1} parent=5 // pred_fallthru
        _
      %p603 = scmp.le.s32.totalorder 2, %s15
      // Predicated region
      $region49: #{tpu_custom_call.1} parent=5 // pred_check
        %p604 = pneg %p603
      $region50: #{tpu_custom_call.1} parent=5 // pred_check_branch
        %606 = sbr.rel (%p604) target = $region52
      $region51: #{tpu_custom_call.1} parent=5 // pred_region
        %s607 = ssub.s32 %s15, 2
        // Predicated region
        $region53: #{tpu_custom_call.1} parent=51 // pred_check
          %p608 = pneg %p198
        $region54: #{tpu_custom_call.1} parent=51 // pred_check_branch
          %610 = sbr.rel (%p608) target = $region56
        $region55: #{tpu_custom_call.1} parent=51 // pred_region
          %s611 = sand.u32 %s183, 1
          %s612 = scalar_lea.sflag [#allocation3], %s611
          %s613 = sand.u32 %s183, 1
          %s614 = smul.addr %s613, 32
          %s615 = scalar_lea.vmem [#allocation2], %s614
          %616 = dma.done %s612, 512
        $region56: #{tpu_custom_call.1} parent=51 // pred_fallthru
          _
      $region52: #{tpu_custom_call.1} parent=5 // pred_fallthru
        _
    $region6: #{tpu_custom_call.1} parent=1 // loop_footer
      %s19 = sadd.s32 1, %s15
    $region7: #{tpu_custom_call.1} parent=1 // loop_footer_branch
      %14 = sbr.rel target = $region3
    $region8: #{tpu_custom_call.1} parent=1 // loop_exit
      _
    %617 = vsyncpa [#allocation3], 1
    %s618 = scalar_lea.sflag [#allocation3], 1
    %619 = vsyncpa %s618, 1

</llo_original>
